<compile_context>
chip_gen: v5e
topology: v5e:2x2
jax: 0.10.0
libtpu: 0.0.40
codegen_flags: <defaults>
</compile_context>

<pallas_src>
import functools

import jax
import jax.numpy as jnp
from jax.experimental import pallas as pl
from jax.experimental.pallas import tpu as pltpu

EPS = 1e-3


# --------------------------------------------------------------------------- #
# Tiling / budget helpers
# --------------------------------------------------------------------------- #
def _round_up(x, m):
    return ((x + m - 1) // m) * m


def _round_down(x, m):
    return (x // m) * m


def _sublane_pack(itemsize):
    # f32 -> 8 sublanes per vreg row group, bf16 -> 16, int8 -> 32.
    return max(8, 32 // max(itemsize, 1))


def _vmem_capacity_bytes():
    try:
        return int(pltpu.get_tpu_info().vmem_capacity_bytes)
    except Exception:
        return 64 << 20  # conservative (v7x-sized) fallback


def _largest_chunk(l_tile):
    """Lane-chunk width used for the in-kernel partial-sum accumulator."""
    for c in (1024, 512, 256, 128):
        if l_tile % c == 0:
            return c
    return l_tile  # L < 128 case: a single, partial-width chunk


def _pick_tiling(N, C, L, itemsize):
    """Choose (n_tile, l_tile, chunk, c_pad, l_tile_pad, vmem_cap)."""
    vmem_cap = _vmem_capacity_bytes()
    # ~5 MiB blocks on v7x (64 MiB VMEM), ~10 MiB on v5e/v6e (128 MiB VMEM).
    # 2x in + 2x out double buffers of this size stay well under the limit.
    block_budget = max(2 << 20, vmem_cap // 12)

    c_pad = _round_up(C, _sublane_pack(itemsize))

    if L >= 128:
        lane_cap = max(128, _round_down(block_budget // (c_pad * itemsize), 128))
        l_tile = min(_round_down(L, 128), lane_cap, 16384)
        if l_tile >= 1024:
            # Keep the in-kernel chunk loop short (<= 16 unrolled chunks).
            l_tile = _round_down(l_tile, 1024)
    else:
        l_tile = L  # whole (short) row; legal since it equals the full dim

    l_tile_pad = _round_up(l_tile, 128)

    # Fold batch rows into each block until the byte budget is reached.  Keep
    # at least two n-blocks when N > 1 so pass 1 can still megacore on v7x.
    n_tile_cap = max(1, N // 2) if N > 1 else 1
    n_tile = 1
    for cand in range(n_tile_cap, 0, -1):
        if N % cand == 0 and cand * c_pad * l_tile_pad * itemsize <= block_budget:
            n_tile = cand
            break

    chunk = _largest_chunk(l_tile)
    return n_tile, l_tile, chunk, c_pad, l_tile_pad, vmem_cap


# --------------------------------------------------------------------------- #
# Pass 1: per-channel sum / sum-of-squares partials (one row of partials per
#         n-block so the N grid axis can run in parallel across cores).
# --------------------------------------------------------------------------- #
def _stats_kernel(x_ref, part_ref, acc_ref, *, l_tile, chunk, seq_len, mask_tail):
    l_idx = pl.program_id(1)

    @pl.when(l_idx == 0)
    def _():
        acc_ref[...] = jnp.zeros_like(acc_ref)

    c = x_ref.shape[1]
    ps = jnp.zeros((c, chunk), jnp.float32)  # lane-dense partial sum
    pq = jnp.zeros((c, chunk), jnp.float32)  # lane-dense partial sum of squares
    base = l_idx * l_tile
    for j in range(0, l_tile, chunk):  # static, short unrolled loop
        xc = x_ref[:, :, pl.ds(j, chunk)].astype(jnp.float32)  # (n_tile, C, chunk)
        if mask_tail:
            lane = jax.lax.broadcasted_iota(jnp.int32, (1, 1, chunk), 2)
            xc = jnp.where(base + j + lane < seq_len, xc, 0.0)
        ps = ps + jnp.sum(xc, axis=0)
        pq = pq + jnp.sum(xc * xc, axis=0)
    acc_ref[0] += ps
    acc_ref[1] += pq

    @pl.when(l_idx == pl.num_programs(1) - 1)
    def _():
        # Single cross-lane reduction + store per n-block.
        part_ref[0] = jnp.sum(acc_ref[...], axis=-1)  # (2, C)


# --------------------------------------------------------------------------- #
# Pass 2: y = x * scale + shift, then masked_fill(y, x == 0, 0)
# --------------------------------------------------------------------------- #
def _normalize_kernel(x_ref, params_ref, o_ref):
    x = x_ref[...]                                   # (n_tile, C, l_tile)
    scale = params_ref[0].astype(jnp.float32)        # (C, 1)
    shift = params_ref[1].astype(jnp.float32)        # (C, 1)
    y = x.astype(jnp.float32) * scale + shift
    o_ref[...] = jnp.where(x == 0, 0.0, y).astype(o_ref.dtype)


# --------------------------------------------------------------------------- #
# Wrapper
# --------------------------------------------------------------------------- #
def masked_batch_norm_1d(x, gamma, beta):
    """x: (N, C, L). gamma, beta: (C,). Training-mode masked BatchNorm1d."""
    N, C, L = x.shape
    itemsize = jnp.dtype(x.dtype).itemsize
    n_tile, l_tile, chunk, c_pad, l_tile_pad, vmem_cap = _pick_tiling(
        N, C, L, itemsize)
    n_blocks = N // n_tile
    grid_l = pl.cdiv(L, l_tile)
    mask_tail = (L % l_tile) != 0

    block_bytes = n_tile * c_pad * l_tile_pad * itemsize
    scratch_bytes = 2 * c_pad * _round_up(chunk, 128) * 4
    # 2x in + 2x out double-buffers + scratch/params + headroom, kept well
    # under the physical VMEM of every generation (v7x = 64 MiB).
    vmem_limit = int(min(0.8 * vmem_cap,
                         max(4 * block_bytes + scratch_bytes + (4 << 20),
                             32 << 20)))

    # ---- pass 1: per-channel (sum, sumsq) partials per n-block --------------
    stats = pl.pallas_call(
        functools.partial(_stats_kernel, l_tile=l_tile, chunk=chunk,
                          seq_len=L, mask_tail=mask_tail),
        out_shape=jax.ShapeDtypeStruct((n_blocks, 2, C), jnp.float32),
        grid_spec=pltpu.PrefetchScalarGridSpec(
            num_scalar_prefetch=0,
            grid=(n_blocks, grid_l),
            in_specs=[pl.BlockSpec((n_tile, C, l_tile), lambda n, l: (n, 0, l))],
            out_specs=pl.BlockSpec((1, 2, C), lambda n, l: (n, 0, 0)),
            scratch_shapes=[pltpu.VMEM((2, C, chunk), jnp.float32)],
        ),
        compiler_params=pltpu.CompilerParams(
            dimension_semantics=("parallel", "arbitrary"),
            vmem_limit_bytes=vmem_limit,
        ),
    )(x)

    # ---- tiny per-channel glue (C-length vectors) ----------------------------
    totals = jnp.sum(stats, axis=0)                      # (2, C)
    count = jnp.float32(N * L)
    mean = totals[0] / count
    # NOTE: E[x^2] - mean^2 with a clamp; matches BN's biased variance.
    var = jnp.maximum(totals[1] / count - mean * mean, 0.0)
    inv_std = jax.lax.rsqrt(var + EPS)
    scale = gamma.astype(jnp.float32) * inv_std
    shift = beta.astype(jnp.float32) - mean * scale
    params = jnp.stack([scale, shift]).reshape(2, C, 1)  # single resident block

    # ---- pass 2: normalize + mask, fully parallel ----------------------------
    out = pl.pallas_call(
        _normalize_kernel,
        out_shape=jax.ShapeDtypeStruct((N, C, L), x.dtype),
        grid_spec=pltpu.PrefetchScalarGridSpec(
            num_scalar_prefetch=0,
            grid=(n_blocks, grid_l),
            in_specs=[
                pl.BlockSpec((n_tile, C, l_tile), lambda n, l: (n, 0, l)),
                pl.BlockSpec((2, C, 1), lambda n, l: (0, 0, 0)),
            ],
            out_specs=pl.BlockSpec((n_tile, C, l_tile), lambda n, l: (n, 0, l)),
        ),
        compiler_params=pltpu.CompilerParams(
            dimension_semantics=("parallel", "parallel"),
            vmem_limit_bytes=vmem_limit,
        ),
    )(x, params)

    return out


# --------------------------------------------------------------------------- #
# Reference + self-test
# --------------------------------------------------------------------------- #
def _reference(x, gamma, beta):
    mean = jnp.mean(x, axis=(0, 2), keepdims=True)
    var = jnp.mean((x - mean) ** 2, axis=(0, 2), keepdims=True)
    y = (x - mean) / jnp.sqrt(var + EPS)
    y = y * gamma[None, :, None] + beta[None, :, None]
    return jnp.where(x == 0.0, 0.0, y)


if __name__ == "__main__":
    key = jax.random.PRNGKey(0)
    k_x, k_g, k_b = jax.random.split(key, 3)

    N, C, L = 2, 4, 16
    x = jax.random.normal(k_x, (N, C, L), dtype=jnp.float32)
    # Plant exact zeros so the mask branch is exercised.
    x = x.at[0, 1, 3].set(0.0).at[1, 2, 7].set(0.0).at[1, 0, 0].set(0.0)

    gamma = 1.0 + 0.1 * jax.random.normal(k_g, (C,), dtype=jnp.float32)
    beta = 0.1 * jax.random.normal(k_b, (C,), dtype=jnp.float32)

    out = masked_batch_norm_1d(x, gamma, beta)
    out = jax.block_until_ready(out)

    ref = _reference(x, gamma, beta)
    assert jnp.allclose(out, ref, atol=1e-4, rtol=1e-4), "mismatch vs reference"
    # Masked positions must be exactly zero.
    assert out[0, 1, 3] == 0.0 and out[1, 2, 7] == 0.0 and out[1, 0, 0] == 0.0

    print("KERNEL_OK")
</pallas_src>

<mosaic_0001>
module attributes {stable_mosaic.version = 11 : i64} {
  func.func @_stats_kernel(%arg0: i32, %arg1: i32, %arg2: memref<1x4x16xf32, #tpu.memory_space<vmem>>, %arg3: memref<1x2x4xf32, #tpu.memory_space<vmem>>, %arg4: memref<2x4x16xf32, #tpu.memory_space<vmem>>) attributes {dimension_semantics = [#tpu.dimension_semantics<parallel>, #tpu.dimension_semantics<arbitrary>], iteration_bounds = array<i64: 2, 1>, scalar_prefetch = 0 : i64, scratch_operands = 1 : i64, tpu.core_type = #tpu.core_type<tc>, window_params = [{transform_indices = @transform_0, window_bounds = array<i64: 1, 4, 16>}, {transform_indices = @transform_1, window_bounds = array<i64: 1, 2, 4>}]} {
    %c0_i32 = arith.constant 0 : i32
    %0 = arith.cmpi eq, %arg1, %c0_i32 : i32
    %1 = arith.extui %0 : i1 to i32
    %c0_i32_0 = arith.constant 0 : i32
    %2 = arith.cmpi ne, %1, %c0_i32_0 : i32
    scf.if %2 {
      %cst_19 = arith.constant 0.000000e+00 : f32
      %26 = vector.broadcast %cst_19 : f32 to vector<2x4x16xf32>
      %c0_20 = arith.constant 0 : index
      %c0_21 = arith.constant 0 : index
      %c0_22 = arith.constant 0 : index
      %27 = vector.load %arg4[%c0_20, %c0_21, %c0_22] : memref<2x4x16xf32, #tpu.memory_space<vmem>>, vector<2x4x16xf32>
      tpu.vector_store %arg4[%c0_20, %c0_21, %c0_22], %26 {strides = array<i32>} : memref<2x4x16xf32, #tpu.memory_space<vmem>>, vector<2x4x16xf32>,
    } else {
    }
    %cst = arith.constant 0.000000e+00 : f32
    %3 = vector.broadcast %cst : f32 to vector<4x16xf32>
    %cst_1 = arith.constant 0.000000e+00 : f32
    %4 = vector.broadcast %cst_1 : f32 to vector<4x16xf32>
    %c0 = arith.constant 0 : index
    %c0_2 = arith.constant 0 : index
    %c0_3 = arith.constant 0 : index
    %5 = vector.load %arg2[%c0, %c0_2, %c0_3] : memref<1x4x16xf32, #tpu.memory_space<vmem>>, vector<1x4x16xf32>
    %cst_4 = arith.constant dense<0.000000e+00> : vector<4x16xf32>
    %6 = vector.multi_reduction <add>, %5, %cst_4 [0] : vector<1x4x16xf32> to vector<4x16xf32>
    %7 = arith.addf %3, %6 : vector<4x16xf32>
    %8 = arith.mulf %5, %5 : vector<1x4x16xf32>
    %cst_5 = arith.constant dense<0.000000e+00> : vector<4x16xf32>
    %9 = vector.multi_reduction <add>, %8, %cst_5 [0] : vector<1x4x16xf32> to vector<4x16xf32>
    %10 = arith.addf %4, %9 : vector<4x16xf32>
    %c0_6 = arith.constant 0 : index
    %c0_7 = arith.constant 0 : index
    %c0_8 = arith.constant 0 : index
    %11 = vector.load %arg4[%c0_6, %c0_7, %c0_8] : memref<2x4x16xf32, #tpu.memory_space<vmem>>, vector<1x4x16xf32>
    %12 = vector.shape_cast %11 : vector<1x4x16xf32> to vector<4x16xf32>
    %13 = arith.addf %12, %7 : vector<4x16xf32>
    %c0_9 = arith.constant 0 : index
    %c0_10 = arith.constant 0 : index
    %c0_11 = arith.constant 0 : index
    %14 = vector.load %arg4[%c0_9, %c0_10, %c0_11] : memref<2x4x16xf32, #tpu.memory_space<vmem>>, vector<1x4x16xf32>
    %15 = vector.shape_cast %14 : vector<1x4x16xf32> to vector<4x16xf32>
    %16 = vector.shape_cast %13 : vector<4x16xf32> to vector<1x4x16xf32>
    tpu.vector_store %arg4[%c0_9, %c0_10, %c0_11], %16 {strides = array<i32>} : memref<2x4x16xf32, #tpu.memory_space<vmem>>, vector<1x4x16xf32>,
    %c1 = arith.constant 1 : index
    %c0_12 = arith.constant 0 : index
    %c0_13 = arith.constant 0 : index
    %17 = vector.load %arg4[%c1, %c0_12, %c0_13] : memref<2x4x16xf32, #tpu.memory_space<vmem>>, vector<1x4x16xf32>
    %18 = vector.shape_cast %17 : vector<1x4x16xf32> to vector<4x16xf32>
    %19 = arith.addf %18, %10 : vector<4x16xf32>
    %c1_14 = arith.constant 1 : index
    %c0_15 = arith.constant 0 : index
    %c0_16 = arith.constant 0 : index
    %20 = vector.load %arg4[%c1_14, %c0_15, %c0_16] : memref<2x4x16xf32, #tpu.memory_space<vmem>>, vector<1x4x16xf32>
    %21 = vector.shape_cast %20 : vector<1x4x16xf32> to vector<4x16xf32>
    %22 = vector.shape_cast %19 : vector<4x16xf32> to vector<1x4x16xf32>
    tpu.vector_store %arg4[%c1_14, %c0_15, %c0_16], %22 {strides = array<i32>} : memref<2x4x16xf32, #tpu.memory_space<vmem>>, vector<1x4x16xf32>,
    %c0_i32_17 = arith.constant 0 : i32
    %23 = arith.cmpi eq, %arg1, %c0_i32_17 : i32
    %24 = arith.extui %23 : i1 to i32
    %c0_i32_18 = arith.constant 0 : i32
    %25 = arith.cmpi ne, %24, %c0_i32_18 : i32
    scf.if %25 {
      %c0_19 = arith.constant 0 : index
      %c0_20 = arith.constant 0 : index
      %c0_21 = arith.constant 0 : index
      %26 = vector.load %arg4[%c0_19, %c0_20, %c0_21] : memref<2x4x16xf32, #tpu.memory_space<vmem>>, vector<2x4x16xf32>
      %cst_22 = arith.constant dense<0.000000e+00> : vector<2x4xf32>
      %27 = vector.multi_reduction <add>, %26, %cst_22 [2] : vector<2x4x16xf32> to vector<2x4xf32>
      %c0_23 = arith.constant 0 : index
      %c0_24 = arith.constant 0 : index
      %c0_25 = arith.constant 0 : index
      %28 = vector.load %arg3[%c0_23, %c0_24, %c0_25] : memref<1x2x4xf32, #tpu.memory_space<vmem>>, vector<1x2x4xf32>
      %29 = vector.shape_cast %28 : vector<1x2x4xf32> to vector<2x4xf32>
      %30 = vector.shape_cast %27 : vector<2x4xf32> to vector<1x2x4xf32>
      tpu.vector_store %arg3[%c0_23, %c0_24, %c0_25], %30 {strides = array<i32>} : memref<1x2x4xf32, #tpu.memory_space<vmem>>, vector<1x2x4xf32>,
    } else {
    }
    return
  }
  func.func @transform_0(%arg0: i32, %arg1: i32) -> (i32, i32, i32) {
    %c0_i32 = arith.constant 0 : i32
    %c0_i32_0 = arith.constant 0 : i32
    return %arg0, %c0_i32, %arg1 : i32, i32, i32
  }
  func.func @transform_1(%arg0: i32, %arg1: i32) -> (i32, i32, i32) {
    %c0_i32 = arith.constant 0 : i32
    %c0_i32_0 = arith.constant 0 : i32
    %c0_i32_1 = arith.constant 0 : i32
    return %arg0, %c0_i32, %c0_i32_0 : i32, i32, i32
  }
}

</mosaic_0001>

<llo_original>
// kernel: tpu_custom_call.1
$region0: #{tpu_custom_call.1}
  #allocation0 [shape = 'u32[]', space=smem, size = 0x4, offset = 0x4, fixed_abs, tag = 'smem constant byte address 0x4 - core index']
  #allocation1 [shape = 'u32[72,128]{1,0:T(1,128)}', space=vmem, size = 0x9000, scoped, tag = 'internal scratch']
  #allocation2 [shape = 'f32[2,4,16]{2,1,0:T(4,128)}', space=vmem, size = 0x1000, scoped, tag = 'scratch operand']
  %s0 = inlined_call_operand.hbm [shape: f32[2,4,16], index: 0, kind: input, shape index: {}]
  %s1 = inlined_call_operand.hbm [shape: f32[2,2,4], index: 1, kind: output, shape index: {}]
  %s2 = sld [smem:[#allocation0]]
  $region49: #{tpu_custom_call.1} parent=0
    _
  %s4 = ssub.s32 1, %s2
  %s5 = scalar_select 0, %s4, %s2
  $region1: #{tpu_custom_call.1} parent=0
    #allocation3 [shape = 'u8[4096]{0}', space=vmem, size = 0x1000, scoped, tag = 'input window, operand 0']
    #allocation4 [shape = 's32[2]{0}', space=sflag, size = 0x8, scoped, tag = 'scoped memory for tpu_custom_call.1']
    #allocation5 [shape = 's32[2]{0}', space=sflag, size = 0x8, scoped, tag = 'scoped memory for tpu_custom_call.1']
    #allocation6 [shape = 'u8[2048]{0}', space=vmem, size = 0x800, scoped, tag = 'output window, operand 0']
    %6 = vsyncpa [#allocation4], 0
    %s7 = scalar_lea.sflag [#allocation4], 1
    %8 = vsyncpa %s7, 0
    %9 = vsyncpa [#allocation5], 0
    %s10 = scalar_lea.sflag [#allocation5], 1
    %11 = vsyncpa %s10, 0
    loop: start=0, step=1, limit=4
    $region2: #{tpu_custom_call.1} parent=1 // loop_pre_header
      _
    $region3: #{tpu_custom_call.1} parent=1 // loop_header
      %s13 = sphi 0, %s17
      %p14 = scmp.ge.s32.totalorder %s13, 4
      %s20 = sphi 0, %s32
      %s21 = sphi 0, %s28
      %s22 = sphi 0, %s20
      %s23 = sphi 0, %s21
      %s24 = sphi 0, %s22
      %s25 = sphi 0, %s23
      %s37 = sphi 0, %s39
      %s40 = sphi 0, %s37
      %s41 = sphi 0, %s40
      %s57 = sphi 0, %s41
      %s63 = sphi 0, %s65
      %s66 = sphi 0, %s63
      %s67 = sphi 0, %s66
      %s83 = sphi 0, %s67
    $region4: #{tpu_custom_call.1} parent=1 // loop_header_branch
      %16 = sbr.rel (%p14) target = $region8
    $region5: #{tpu_custom_call.1} parent=1 // loop_body
      %s18 = ssub.s32 %s13, 1
      %s19 = ssub.s32 %s13, 2
      %s26 = sadd.s32 1, %s21
      %p27 = scmp.ge.s32.totalorder %s26, 1
      %s28 = scalar_select %p27, 0, %s26
      %s29 = sadd.s32 1, %s20
      %s30 = scalar_select %p27, %s29, %s20
      %p31 = scmp.ge.s32.totalorder %s30, 2
      %s32 = scalar_select %p31, 0, %s30
      %s33 = ssub.s32 %s20, %s32
      %s34 = ssub.s32 %s21, %s28
      %s35 = sor.u32 %s33, %s34
      %p36 = scmp.eq.s32.totalorder %s35, 0
      %s38 = sadd.s32 %s37, 1
      %s39 = scalar_select %p36, %s37, %s38
      %p42 = pneg %p36
      %p43 = scmp.eq.s32.totalorder %s13, 1
      %p44 = por %p42, %p43
      %p45 = scmp.ne.s32.totalorder %s37, %s40
      %p46 = scmp.eq.s32.totalorder %s13, 0
      %p47 = por %p45, %p46
      %p48 = scmp.ne.s32.totalorder %s37, %s40
      %p49 = scmp.eq.s32.totalorder %s18, 1
      %p50 = por %p48, %p49
      %p51 = scmp.ne.s32.totalorder %s40, %s41
      %p52 = scmp.eq.s32.totalorder %s18, 0
      %p53 = por %p51, %p52
      %p54 = scmp.ne.s32.totalorder %s40, %s41
      %p55 = scmp.eq.s32.totalorder %s19, 1
      %p56 = por %p54, %p55
      %p58 = scmp.ne.s32.totalorder %s41, %s57
      %p59 = scmp.eq.s32.totalorder %s19, 0
      %p60 = por %p58, %p59
      %s61 = ssub.s32 %s20, %s32
      %p62 = scmp.eq.s32.totalorder %s61, 0
      %s64 = sadd.s32 %s63, 1
      %s65 = scalar_select %p62, %s63, %s64
      %p68 = pneg %p62
      %p69 = scmp.eq.s32.totalorder %s13, 1
      %p70 = por %p68, %p69
      %p71 = scmp.ne.s32.totalorder %s63, %s66
      %p72 = scmp.eq.s32.totalorder %s13, 0
      %p73 = por %p71, %p72
      %p74 = scmp.ne.s32.totalorder %s63, %s66
      %p75 = scmp.eq.s32.totalorder %s18, 1
      %p76 = por %p74, %p75
      %p77 = scmp.ne.s32.totalorder %s66, %s67
      %p78 = scmp.eq.s32.totalorder %s18, 0
      %p79 = por %p77, %p78
      %p80 = scmp.ne.s32.totalorder %s66, %s67
      %p81 = scmp.eq.s32.totalorder %s19, 1
      %p82 = por %p80, %p81
      %p84 = scmp.ne.s32.totalorder %s67, %s83
      %p85 = scmp.eq.s32.totalorder %s19, 0
      %p86 = por %p84, %p85
      %p87 = scmp.le.s32.totalorder 1, %s13
      %p88 = scmp.lt.s32.totalorder %s13, 3
      %p89 = pnand %p87, %p88
      %p90 = pneg %p89
      // Predicated region
      $region9: #{tpu_custom_call.1} parent=5 // pred_check
        _
      $region10: #{tpu_custom_call.1} parent=5 // pred_check_branch
        %92 = sbr.rel (%p89) target = $region12
      $region11: #{tpu_custom_call.1} parent=5 // pred_region
        %s93 = ssub.s32 %s13, 1
      $region12: #{tpu_custom_call.1} parent=5 // pred_fallthru
        _
      %p94 = scmp.lt.s32.totalorder %s13, 2
      // Predicated region
      $region13: #{tpu_custom_call.1} parent=5 // pred_check
        %p95 = pneg %p94
      $region14: #{tpu_custom_call.1} parent=5 // pred_check_branch
        %97 = sbr.rel (%p95) target = $region16
      $region15: #{tpu_custom_call.1} parent=5 // pred_region
        // Predicated region
        $region17: #{tpu_custom_call.1} parent=15 // pred_check
          %p98 = pneg %p47
        $region18: #{tpu_custom_call.1} parent=15 // pred_check_branch
          %100 = sbr.rel (%p98) target = $region20
        $region19: #{tpu_custom_call.1} parent=15 // pred_region
          %s101 = sand.u32 %s37, 1
          %s102 = scalar_lea.sflag [#allocation4], %s101
          %s103 = sand.u32 %s37, 1
          %s104 = smul.addr %s103, 4
          %s105 = scalar_lea.vmem [#allocation3], %s104
          %107 = vsyncadd %s102, 0
          %s108 = sadd.s32 %s21, %s20
          %s109 = smul.addr %s108, 4
          %s110 = scalar_lea.hbm %s0, %s109
          %s112 = sshll.u32 %s110, 4
          %s113 = int_to_ptr.hbm [resolvable:$true] %s112
          %s114 = sshll.u32 %s105, 4
          %s115 = int_to_ptr.vmem [resolvable:$true] %s114
          %117 = dma.hbm_to_vmem [thread:$0]  %s113, 64, %s115, %s102
        $region20: #{tpu_custom_call.1} parent=15 // pred_fallthru
          _
      $region16: #{tpu_custom_call.1} parent=5 // pred_fallthru
        _
      %p118 = scmp.le.s32.totalorder 1, %s13
      %p119 = scmp.lt.s32.totalorder %s13, 3
      %p120 = pnand %p118, %p119
      %p121 = pneg %p120
      // Predicated region
      $region21: #{tpu_custom_call.1} parent=5 // pred_check
        _
      $region22: #{tpu_custom_call.1} parent=5 // pred_check_branch
        %123 = sbr.rel (%p120) target = $region24
      $region23: #{tpu_custom_call.1} parent=5 // pred_region
        %s124 = ssub.s32 %s13, 1
        %s125 = sand.u32 %s40, 1
        %s126 = scalar_lea.sflag [#allocation4], %s125
        %s127 = sand.u32 %s40, 1
        %s128 = smul.addr %s127, 4
        %s129 = scalar_lea.vmem [#allocation3], %s128
        // Predicated region
        $region25: #{tpu_custom_call.1} parent=23 // pred_check
          %p130 = pneg %p53
        $region26: #{tpu_custom_call.1} parent=23 // pred_check_branch
          %132 = sbr.rel (%p130) target = $region28
        $region27: #{tpu_custom_call.1} parent=23 // pred_region
          %134 = dma.done %s126, 64
        $region28: #{tpu_custom_call.1} parent=23 // pred_fallthru
          _
        %s135 = sand.u32 %s40, 1
        %s136 = scalar_lea.sflag [#allocation4], %s135
        %s137 = sand.u32 %s40, 1
        %s138 = smul.addr %s137, 4
        %s139 = scalar_lea.vmem [#allocation3], %s138
        %p140 = pneg %p53
        %p141 = pneg %p50
        %p142 = pneg %p79
        %p143 = pneg %p76
        %s144 = sand.u32 %s66, 1
        %s145 = scalar_lea.sflag [#allocation5], %s144
        %s146 = sand.u32 %s66, 1
        %s147 = smul.addr %s146, 2
        %s148 = scalar_lea.vmem [#allocation6], %s147
        %p149 = scmp.eq.s32.totalorder %s23, 0
        // Predicated region
        $region29: #{tpu_custom_call.1} parent=23 // pred_check
          %p150 = pneg %p149
        $region30: #{tpu_custom_call.1} parent=23 // pred_check_branch
          %152 = sbr.rel (%p150) target = $region32
        $region31: #{tpu_custom_call.1} parent=23 // pred_region
          %vm153 = vcmask 125952
          %154 = vst.msk [vmem:[#allocation2] sm:$0xf] %vm153, 0.0
          %155 = vst.msk [vmem:[#allocation2 + $0x4] sm:$0xf] %vm153, 0.0
        $region32: #{tpu_custom_call.1} parent=23 // pred_fallthru
          _
        %v156 = vld [vmem:[%s129] sm:$0xf]
        %v157 = vadd.f32 %v156, 0.0
        %v158 = vadd.f32 %v157, 0.0
        %v159 = vmul.f32 %v156, %v156
        %v160 = vadd.f32 %v159, 0.0
        %v161 = vadd.f32 %v160, 0.0
        %v162 = vld [vmem:[#allocation2] sm:$0xf]
        %v163 = vadd.f32 %v162, %v158
        %vm164 = vcmask 125952
        %165 = vst.msk [vmem:[#allocation2] sm:$0xf] %vm164, %v163
        %s166 = scalar_lea.vmem [#allocation2], 4
        %v167 = vld [vmem:[%s166] sm:$0xf]
        %v168 = vadd.f32 %v167, %v161
        %169 = vst.msk [vmem:[%s166] sm:$0xf] %vm164, %v168
        // Predicated region
        $region33: #{tpu_custom_call.1} parent=23 // pred_check
          %p170 = pneg %p149
        $region34: #{tpu_custom_call.1} parent=23 // pred_check_branch
          %172 = sbr.rel (%p170) target = $region36
        $region35: #{tpu_custom_call.1} parent=23 // pred_region
          %v173 = vld [vmem:[#allocation2] sm:$0xf]
          %v174 = vld [vmem:[#allocation2 + $0x4] sm:$0xf]
          %v175 = vsel %vm164, %v173, 0.0
          %176 = vadd.xlane.f32.xlu0 %v175
          %v177 = vpop.xlane.xlu0 %176
          %v178 = vsel %vm164, %v174, 0.0
          %179 = vadd.xlane.f32.xlu0 %v178
          %v180 = vpop.xlane.xlu0 %179
          %v183 = vlaneseq
          %v184 = vand.u32 %v183, 127
          %v185 = vperm.slane %v177, %v184
          %v186 = vperm.slane %v180, %v184
          %vm187 = vcmask 1041409
          %v188 = vsel %vm187, %v186, %v185
          %vm190 = vcmask 25600
          %191 = vst.msk [vmem:[%s148] sm:$0x3] %vm190, %v188
        $region36: #{tpu_custom_call.1} parent=23 // pred_fallthru
          _
        %s192 = sand.u32 %s66, 1
        %s193 = scalar_lea.sflag [#allocation5], %s192
        %s194 = sand.u32 %s66, 1
        %s195 = smul.addr %s194, 2
        %s196 = scalar_lea.vmem [#allocation6], %s195
        // Predicated region
        $region37: #{tpu_custom_call.1} parent=23 // pred_check
          %p197 = pneg %p76
        $region38: #{tpu_custom_call.1} parent=23 // pred_check_branch
          %199 = sbr.rel (%p197) target = $region40
        $region39: #{tpu_custom_call.1} parent=23 // pred_region
          %201 = vsyncadd %s193, 0
          %s202 = smul.addr %s22, 2
          %s203 = scalar_lea.hbm %s1, %s202
          %s205 = sshll.u32 %s196, 4
          %s206 = int_to_ptr.vmem [resolvable:$true] %s205
          %s207 = sshll.u32 %s203, 4
          %s208 = int_to_ptr.hbm [resolvable:$true] %s207
          %210 = dma.vmem_to_hbm [thread:$0]  %s206, 32, %s208, %s193
        $region40: #{tpu_custom_call.1} parent=23 // pred_fallthru
          _
      $region24: #{tpu_custom_call.1} parent=5 // pred_fallthru
        _
      %p211 = scmp.le.s32.totalorder 2, %s13
      // Predicated region
      $region41: #{tpu_custom_call.1} parent=5 // pred_check
        %p212 = pneg %p211
      $region42: #{tpu_custom_call.1} parent=5 // pred_check_branch
        %214 = sbr.rel (%p212) target = $region44
      $region43: #{tpu_custom_call.1} parent=5 // pred_region
        %s215 = ssub.s32 %s13, 2
        // Predicated region
        $region45: #{tpu_custom_call.1} parent=43 // pred_check
          %p216 = pneg %p82
        $region46: #{tpu_custom_call.1} parent=43 // pred_check_branch
          %218 = sbr.rel (%p216) target = $region48
        $region47: #{tpu_custom_call.1} parent=43 // pred_region
          %s219 = sand.u32 %s67, 1
          %s220 = scalar_lea.sflag [#allocation5], %s219
          %s221 = sand.u32 %s67, 1
          %s222 = smul.addr %s221, 2
          %s223 = scalar_lea.vmem [#allocation6], %s222
          %225 = dma.done %s220, 32
        $region48: #{tpu_custom_call.1} parent=43 // pred_fallthru
          _
      $region44: #{tpu_custom_call.1} parent=5 // pred_fallthru
        _
    $region6: #{tpu_custom_call.1} parent=1 // loop_footer
      %s17 = sadd.s32 1, %s13
    $region7: #{tpu_custom_call.1} parent=1 // loop_footer_branch
      %12 = sbr.rel target = $region3
    $region8: #{tpu_custom_call.1} parent=1 // loop_exit
      _
    %226 = vsyncpa [#allocation4], 1
    %s227 = scalar_lea.sflag [#allocation4], 1
    %228 = vsyncpa %s227, 1
    %229 = vsyncpa [#allocation5], 1
    %s230 = scalar_lea.sflag [#allocation5], 1
    %231 = vsyncpa %s230, 1

</llo_original>
